<compile_context>
chip_gen: v7x
topology: tpu7x:2x2x1
jax: 0.10.0
libtpu: 0.0.40
codegen_flags: <defaults>
</compile_context>

<pallas_src>
import functools
import numpy as np
import jax
import jax.numpy as jnp
from jax.experimental import pallas as pl
from jax.experimental.pallas import tpu as pltpu

MAX_IMF = 10
N_PHYSIO = 3
N_SIFT = 3          # fixed sifting iterations per IMF (surrogate for EMD.MAX_ITERATION=50)
MIN_LENGTH = 100
_LANE = 128
_SUBLANE = 8


def _round_up(x, m):
    return ((x + m - 1) // m) * m


def _cdiv(a, b):
    return -(-a // b)


@functools.lru_cache(maxsize=8)
def _build_operators(L, L_pad, max_imf=MAX_IMF, n_sift=N_SIFT):
    """Fold the surrogate-EMD cascade (banded mean-envelope sifting + residual
    cascade) into per-IMF (L_pad, L_pad) operators, composed in float64 on the
    host (the (I - W)^N near-cancellation is lost if composed in bf16),
    zero-padded from L to the lane-aligned L_pad, concatenated column-wise per
    output group, cast to bf16 and uploaded to device ONCE (lru_cache'd)."""
    idx = np.arange(L)
    eye = np.eye(L, dtype=np.float64)
    R = eye.copy()                                     # residual operator
    blocks = []
    for k in range(max_imf):
        r = k + 2                                      # growing half-window -> coarser scale
        band = (np.abs(idx[:, None] - idx[None, :]) <= r).astype(np.float64)
        band /= band.sum(axis=1, keepdims=True)        # boundary-aware normalization
        A = np.linalg.matrix_power(eye - band, n_sift)  # sifting operator for IMF k
        P = A @ R                                      # imf_k = P @ signal
        R = (eye - A) @ R                              # next residual
        blk = np.zeros((L_pad, L_pad), dtype=np.float32)
        blk[:L, :L] = P.T.astype(np.float32)           # row-vector form: imf_k = x @ P.T
        blocks.append(blk)
    w_physio = np.concatenate(blocks[:N_PHYSIO], axis=1)   # (L_pad, 3*L_pad)
    w_ident = np.concatenate(blocks[N_PHYSIO:], axis=1)    # (L_pad, (max_imf-3)*L_pad)
    to_dev = lambda a: jax.device_put(jnp.asarray(a).astype(jnp.bfloat16))
    return to_dev(w_physio), to_dev(w_ident)


def _emd_group_kernel(true_len, x_ref, w_ref, out_ref):
    """One IMF tile (grid axis 0) x one batch tile (grid axis 1):
    check_signal gate + a single lane-dense bf16 MXU matmul."""
    x = x_ref[...].astype(jnp.float32)                         # (TB, L_pad), f32 VPU work

    # check_signal(): std >= 1e-6 per row (also covers all-zero rows).  Padded
    # lanes/rows are exact zeros; the column mask keeps the centered sum exact.
    # A NaN anywhere makes std NaN and `NaN >= 1e-6` is False, which subsumes
    # the torch module's explicit isnan() branch (no separate NaN sweep).
    col = jax.lax.broadcasted_iota(jnp.int32, x.shape, 1)
    inb = col < true_len
    inv_n = 1.0 / float(true_len)
    mean = jnp.sum(x, axis=1, keepdims=True) * inv_n
    xc = jnp.where(inb, x - mean, 0.0)
    std = jnp.sqrt(jnp.sum(xc * xc, axis=1, keepdims=True) * inv_n)
    valid = std >= 1e-6                                        # (TB, 1) bool

    # One bf16 MXU matmul with f32 accumulation: imf_k tile for this batch tile.
    imf = jnp.dot(x.astype(jnp.bfloat16), w_ref[...],
                  preferred_element_type=jnp.float32)          # (TB, L_pad)

    # where (not multiply): NaN rows must become exact zeros.
    out_ref[...] = jnp.where(valid, imf, 0.0).astype(out_ref.dtype)


def _run_group(x_pad, w_group, n_imf, L, L_pad, TB, b_pad, vmem_limit):
    nb = b_pad // TB
    kernel = functools.partial(_emd_group_kernel, L)
    return pl.pallas_call(
        kernel,
        out_shape=jax.ShapeDtypeStruct((b_pad, n_imf * L_pad), jnp.float32),
        # IMF axis outermost: each (L_pad, L_pad) weight tile is DMA'd exactly
        # once; x re-reads per IMF are tiny relative to the weight/output.
        grid=(n_imf, nb),
        in_specs=[
            pl.BlockSpec((TB, L_pad), lambda k, i: (i, 0)),       # batch tile of signals
            pl.BlockSpec((L_pad, L_pad), lambda k, i: (0, k)),    # one IMF operator tile
        ],
        out_specs=pl.BlockSpec((TB, L_pad), lambda k, i: (i, k)),  # lane-dense output tile
        compiler_params=pltpu.CompilerParams(
            # Every (k, i) step writes a distinct output block -> both axes are
            # genuinely parallel; v7x's two TensorCores can split on either
            # (IMF axis keeps both busy even for a single batch tile).
            dimension_semantics=("parallel", "parallel"),
            vmem_limit_bytes=vmem_limit,
        ),
    )(x_pad, w_group)


def emd_decompose(x, min_length=MIN_LENGTH, max_imf=MAX_IMF):
    """x: (B, 1, L) float32 -> {'physio': (B, 3, L), 'identity': (B, max_imf-3, L)}"""
    B, _, L = x.shape
    n_id = max_imf - N_PHYSIO

    if L < min_length:
        # check_signal() fails for every row -> all-zero IMFs (matches the torch path).
        return {
            "physio": jnp.zeros((B, N_PHYSIO, L), jnp.float32),
            "identity": jnp.zeros((B, n_id, L), jnp.float32),
        }

    L_pad = _round_up(L, _LANE)
    x2d = x[:, 0, :].astype(jnp.float32)

    # Batch tile: up to 256 rows (fills the 256x256 MXU M dim on v6e/v7x); keep
    # >=2 grid steps on the batch axis when enough rows exist.
    b_pad8 = _round_up(B, _SUBLANE)
    TB = min(256, b_pad8)
    if b_pad8 // TB < 2 and b_pad8 >= 2 * _SUBLANE:
        TB = _round_up(_cdiv(b_pad8, 2), _SUBLANE)
    b_pad = _round_up(B, TB)

    if b_pad != B or L_pad != L:
        # Zero rows fail check_signal -> zero IMFs; zero columns keep the moment
        # sums and the matmul exact (operator pad rows/cols are zero). Sliced off below.
        x2d = jnp.pad(x2d, ((0, b_pad - B), (0, L_pad - L)))

    w_physio, w_ident = _build_operators(L, L_pad, max_imf, N_SIFT)

    # VMEM: double-buffered (L_pad, L_pad) bf16 weight tile + double-buffered
    # x / out blocks + headroom, clamped to ~85% of this chip's per-core
    # capacity (64 MiB/TC on v7x, 128 MiB on v5e/v6e).
    try:
        vmem_cap = int(pltpu.get_tpu_info().vmem_capacity_bytes)
    except Exception:
        vmem_cap = 64 << 20
    need = (2 * L_pad * L_pad * 2      # weight tile, double-buffered, bf16
            + 2 * TB * L_pad * 4       # x tile, double-buffered, f32
            + 2 * TB * L_pad * 4       # out tile, double-buffered, f32
            + (4 << 20))               # headroom
    vmem_limit = int(min(max(need, 32 << 20), int(0.85 * vmem_cap)))

    # Two calls emit the two dict members directly -> no f32 slab slice
    # round-trip through HBM in the wrapper.
    out_p = _run_group(x2d, w_physio, N_PHYSIO, L, L_pad, TB, b_pad, vmem_limit)
    out_i = _run_group(x2d, w_ident, n_id, L, L_pad, TB, b_pad, vmem_limit)

    def _finish(o, n):
        o = o.reshape(b_pad, n, L_pad)         # free: pure layout metadata
        if b_pad != B or L_pad != L:
            o = o[:B, :, :L]
        return o

    return {"physio": _finish(out_p, N_PHYSIO), "identity": _finish(out_i, n_id)}


if __name__ == "__main__":
    key = jax.random.PRNGKey(0)
    B, C, L = 2, 1, 128   # L >= min_length=100 and lane-aligned
    x = jax.random.normal(key, (B, C, L), dtype=jnp.float32)
    x = x.at[1].set(0.0)  # row 1 is all-zero -> check_signal fails -> zero IMFs

    out = emd_decompose(x)
    jax.block_until_ready(out["physio"])
    jax.block_until_ready(out["identity"])

    assert out["physio"].shape == (B, N_PHYSIO, L)
    assert out["identity"].shape == (B, MAX_IMF - N_PHYSIO, L)
    assert not bool(jnp.any(jnp.isnan(out["physio"])))
    assert not bool(jnp.any(jnp.isnan(out["identity"])))

    # validity gating: the all-zero signal must produce exactly-zero IMFs,
    # the valid signal must produce non-trivial IMFs.
    assert bool(jnp.all(out["physio"][1] == 0.0))
    assert bool(jnp.all(out["identity"][1] == 0.0))
    assert bool(jnp.any(jnp.abs(out["physio"][0]) > 0.0))

    # plumbing check: kernel matmul matches the same bf16 composed-operator
    # contraction done in plain jnp.
    L_pad = _round_up(L, _LANE)
    w_p, w_i = _build_operators(L, L_pad, MAX_IMF, N_SIFT)
    x0 = jnp.pad(x[0, 0], (0, L_pad - L)).astype(jnp.bfloat16)
    ref_p = jnp.dot(x0, w_p, preferred_element_type=jnp.float32)
    ref_p = ref_p.reshape(N_PHYSIO, L_pad)[:, :L]
    ref_i = jnp.dot(x0, w_i, preferred_element_type=jnp.float32)
    ref_i = ref_i.reshape(MAX_IMF - N_PHYSIO, L_pad)[:, :L]
    assert bool(jnp.allclose(out["physio"][0], ref_p, atol=2e-2, rtol=2e-2))
    assert bool(jnp.allclose(out["identity"][0], ref_i, atol=2e-2, rtol=2e-2))

    print("KERNEL_OK")
</pallas_src>

<mosaic_0001>
module attributes {stable_mosaic.version = 11 : i64} {
  func.func @_emd_group_kernel(%arg0: i32, %arg1: i32, %arg2: memref<8x128xf32, #tpu.memory_space<vmem>>, %arg3: memref<128x128xbf16, #tpu.memory_space<vmem>>, %arg4: memref<8x128xf32, #tpu.memory_space<vmem>>) attributes {dimension_semantics = [#tpu.dimension_semantics<parallel>, #tpu.dimension_semantics<parallel>], iteration_bounds = array<i64: 3, 1>, scalar_prefetch = 0 : i64, scratch_operands = 0 : i64, tpu.core_type = #tpu.core_type<tc>, window_params = [{transform_indices = @transform_0, window_bounds = array<i64: 8, 128>}, {transform_indices = @transform_1, window_bounds = array<i64: 128, 128>}, {transform_indices = @transform_2, window_bounds = array<i64: 8, 128>}]} {
    %c0 = arith.constant 0 : index
    %c0_0 = arith.constant 0 : index
    %0 = vector.load %arg2[%c0, %c0_0] : memref<8x128xf32, #tpu.memory_space<vmem>>, vector<8x128xf32>
    %1 = tpu.iota {dimensions = array<i32: 1>} : vector<8x128xi32>
    %c128_i32 = arith.constant 128 : i32
    %2 = vector.broadcast %c128_i32 : i32 to vector<8x128xi32>
    %3 = arith.cmpi slt, %1, %2 : vector<8x128xi32>
    %cst = arith.constant dense<0.000000e+00> : vector<8xf32>
    %4 = vector.multi_reduction <add>, %0, %cst [1] : vector<8x128xf32> to vector<8xf32>
    %5 = vector.shape_cast %4 : vector<8xf32> to vector<8x1xf32>
    %cst_1 = arith.constant 7.812500e-03 : f32
    %6 = vector.broadcast %cst_1 : f32 to vector<8x1xf32>
    %7 = arith.mulf %5, %6 : vector<8x1xf32>
    %8 = vector.broadcast %7 : vector<8x1xf32> to vector<8x128xf32>
    %9 = arith.subf %0, %8 : vector<8x128xf32>
    %cst_2 = arith.constant 0.000000e+00 : f32
    %10 = vector.broadcast %cst_2 : f32 to vector<8x128xf32>
    %11 = arith.select %3, %9, %10 : vector<8x128xi1>, vector<8x128xf32>
    %12 = arith.mulf %11, %11 : vector<8x128xf32>
    %cst_3 = arith.constant dense<0.000000e+00> : vector<8xf32>
    %13 = vector.multi_reduction <add>, %12, %cst_3 [1] : vector<8x128xf32> to vector<8xf32>
    %14 = vector.shape_cast %13 : vector<8xf32> to vector<8x1xf32>
    %cst_4 = arith.constant 7.812500e-03 : f32
    %15 = vector.broadcast %cst_4 : f32 to vector<8x1xf32>
    %16 = arith.mulf %14, %15 : vector<8x1xf32>
    %17 = math.sqrt %16 : vector<8x1xf32>
    %cst_5 = arith.constant 9.99999997E-7 : f32
    %18 = vector.broadcast %cst_5 : f32 to vector<8x1xf32>
    %19 = arith.cmpf oge, %17, %18 : vector<8x1xf32>
    %20 = arith.truncf %0 : vector<8x128xf32> to vector<8x128xbf16>
    %c0_6 = arith.constant 0 : index
    %c0_7 = arith.constant 0 : index
    %21 = vector.load %arg3[%c0_6, %c0_7] : memref<128x128xbf16, #tpu.memory_space<vmem>>, vector<128x128xbf16>
    %cst_8 = arith.constant dense<0.000000e+00> : vector<8x128xf32>
    %22 = tpu.matmul %20, %21, %cst_8 {dimension_numbers = #tpu.dot_dimension_numbers<[1], [0], [0], [1], [0, 0, 1, 1], [], []>} : vector<8x128xbf16>, vector<128x128xbf16>, vector<8x128xf32> -> vector<8x128xf32>
    %cst_9 = arith.constant 0.000000e+00 : f32
    %23 = vector.shape_cast %19 : vector<8x1xi1> to vector<8x1xi1>
    %24 = vector.broadcast %23 : vector<8x1xi1> to vector<8x128xi1>
    %25 = vector.broadcast %cst_9 : f32 to vector<8x128xf32>
    %26 = arith.select %24, %22, %25 : vector<8x128xi1>, vector<8x128xf32>
    %c0_10 = arith.constant 0 : index
    %c0_11 = arith.constant 0 : index
    %27 = vector.load %arg4[%c0_10, %c0_11] : memref<8x128xf32, #tpu.memory_space<vmem>>, vector<8x128xf32>
    tpu.vector_store %arg4[%c0_10, %c0_11], %26 {strides = array<i32>} : memref<8x128xf32, #tpu.memory_space<vmem>>, vector<8x128xf32>,
    return
  }
  func.func @transform_0(%arg0: i32, %arg1: i32) -> (i32, i32) {
    %c0_i32 = arith.constant 0 : i32
    %c0_i32_0 = arith.constant 0 : i32
    return %arg1, %c0_i32 : i32, i32
  }
  func.func @transform_1(%arg0: i32, %arg1: i32) -> (i32, i32) {
    %c0_i32 = arith.constant 0 : i32
    %c0_i32_0 = arith.constant 0 : i32
    return %c0_i32, %arg0 : i32, i32
  }
  func.func @transform_2(%arg0: i32, %arg1: i32) -> (i32, i32) {
    %c0_i32 = arith.constant 0 : i32
    return %arg1, %arg0 : i32, i32
  }
}

</mosaic_0001>

<llo_original>
// kernel: tpu_custom_call.1
$region0: #{tpu_custom_call.1}
  #allocation0 [shape = 'u32[]', space=smem, size = 0x4, offset = 0x4, fixed_abs, tag = 'smem constant byte address 0x4 - core index']
  #allocation1 [shape = 'u32[144,128]{1,0:T(1,128)}', space=vmem, size = 0x12000, scoped, tag = 'internal scratch']
  %s0 = inlined_call_operand.hbm [shape: f32[8,128], index: 0, kind: input, shape index: {}]
  %s1 = inlined_call_operand.hbm [shape: bf16[128,384], index: 1, kind: input, shape index: {}]
  %s2 = inlined_call_operand.hbm [shape: f32[8,384], index: 2, kind: output, shape index: {}]
  %s3 = sld [smem:[#allocation0]]
  $region49: #{tpu_custom_call.1} parent=0
    _
  %s5 = ssub.s32 1, %s3
  %s6 = scalar_select 0, %s5, %s3
  $region1: #{tpu_custom_call.1} parent=0
    #allocation2 [shape = 'u8[4096]{0}', space=vmem, size = 0x1000, scoped, tag = 'input window, operand 0, single buffered']
    #allocation3 [shape = 's32[2]{0}', space=sflag, size = 0x8, scoped, tag = 'scoped memory for tpu_custom_call.1']
    #allocation4 [shape = 's32[2]{0}', space=sflag, size = 0x8, scoped, tag = 'scoped memory for tpu_custom_call.1']
    #allocation5 [shape = 'u8[65536]{0}', space=vmem, size = 0x10000, scoped, tag = 'input window, operand 1']
    #allocation6 [shape = 's32[2]{0}', space=sflag, size = 0x8, scoped, tag = 'scoped memory for tpu_custom_call.1']
    #allocation7 [shape = 'u8[8192]{0}', space=vmem, size = 0x2000, scoped, tag = 'output window, operand 0']
    %7 = vsyncpa [#allocation3], 0
    %8 = vsyncpa [#allocation6], 0
    %s9 = scalar_lea.sflag [#allocation6], 1
    %10 = vsyncpa %s9, 0
    %11 = vsyncpa [#allocation4], 0
    %s12 = scalar_lea.sflag [#allocation4], 1
    %13 = vsyncpa %s12, 0
    loop: start=0, step=1, limit=5
    $region2: #{tpu_custom_call.1} parent=1 // loop_pre_header
      _
    $region3: #{tpu_custom_call.1} parent=1 // loop_header
      %s15 = sphi 0, %s19
      %p16 = scmp.ge.s32.totalorder %s15, 5
      %s22 = sphi 0, %s34
      %s23 = sphi 0, %s30
      %s24 = sphi 0, %s22
      %s25 = sphi 0, %s23
      %s26 = sphi 0, %s24
      %s27 = sphi 0, %s25
      %s37 = sphi 0, %s39
      %s40 = sphi 0, %s37
      %s41 = sphi 0, %s40
      %s57 = sphi 0, %s41
      %s63 = sphi 0, %s65
      %s66 = sphi 0, %s63
      %s67 = sphi 0, %s66
      %s83 = sphi 0, %s67
      %s91 = sphi 0, %s93
      %s94 = sphi 0, %s91
      %s95 = sphi 0, %s94
      %s111 = sphi 0, %s95
    $region4: #{tpu_custom_call.1} parent=1 // loop_header_branch
      %18 = sbr.rel (%p16) target = $region8
    $region5: #{tpu_custom_call.1} parent=1 // loop_body
      %s20 = ssub.s32 %s15, 1
      %s21 = ssub.s32 %s15, 2
      %s28 = sadd.s32 1, %s23
      %p29 = scmp.ge.s32.totalorder %s28, 1
      %s30 = scalar_select %p29, 0, %s28
      %s31 = sadd.s32 1, %s22
      %s32 = scalar_select %p29, %s31, %s22
      %p33 = scmp.ge.s32.totalorder %s32, 3
      %s34 = scalar_select %p33, 0, %s32
      %s35 = ssub.s32 %s23, %s30
      %p36 = scmp.eq.s32.totalorder %s35, 0
      %s38 = sadd.s32 %s37, 1
      %s39 = scalar_select %p36, %s37, %s38
      %p42 = pneg %p36
      %p43 = scmp.eq.s32.totalorder %s15, 2
      %p44 = por %p42, %p43
      %p45 = scmp.ne.s32.totalorder %s37, %s40
      %p46 = scmp.eq.s32.totalorder %s15, 0
      %p47 = por %p45, %p46
      %p48 = scmp.ne.s32.totalorder %s37, %s40
      %p49 = scmp.eq.s32.totalorder %s20, 2
      %p50 = por %p48, %p49
      %p51 = scmp.ne.s32.totalorder %s40, %s41
      %p52 = scmp.eq.s32.totalorder %s20, 0
      %p53 = por %p51, %p52
      %p54 = scmp.ne.s32.totalorder %s40, %s41
      %p55 = scmp.eq.s32.totalorder %s21, 2
      %p56 = por %p54, %p55
      %p58 = scmp.ne.s32.totalorder %s41, %s57
      %p59 = scmp.eq.s32.totalorder %s21, 0
      %p60 = por %p58, %p59
      %s61 = ssub.s32 %s22, %s34
      %p62 = scmp.eq.s32.totalorder %s61, 0
      %s64 = sadd.s32 %s63, 1
      %s65 = scalar_select %p62, %s63, %s64
      %p68 = pneg %p62
      %p69 = scmp.eq.s32.totalorder %s15, 2
      %p70 = por %p68, %p69
      %p71 = scmp.ne.s32.totalorder %s63, %s66
      %p72 = scmp.eq.s32.totalorder %s15, 0
      %p73 = por %p71, %p72
      %p74 = scmp.ne.s32.totalorder %s63, %s66
      %p75 = scmp.eq.s32.totalorder %s20, 2
      %p76 = por %p74, %p75
      %p77 = scmp.ne.s32.totalorder %s66, %s67
      %p78 = scmp.eq.s32.totalorder %s20, 0
      %p79 = por %p77, %p78
      %p80 = scmp.ne.s32.totalorder %s66, %s67
      %p81 = scmp.eq.s32.totalorder %s21, 2
      %p82 = por %p80, %p81
      %p84 = scmp.ne.s32.totalorder %s67, %s83
      %p85 = scmp.eq.s32.totalorder %s21, 0
      %p86 = por %p84, %p85
      %s87 = ssub.s32 %s23, %s30
      %s88 = ssub.s32 %s22, %s34
      %s89 = sor.u32 %s87, %s88
      %p90 = scmp.eq.s32.totalorder %s89, 0
      %s92 = sadd.s32 %s91, 1
      %s93 = scalar_select %p90, %s91, %s92
      %p96 = pneg %p90
      %p97 = scmp.eq.s32.totalorder %s15, 2
      %p98 = por %p96, %p97
      %p99 = scmp.ne.s32.totalorder %s91, %s94
      %p100 = scmp.eq.s32.totalorder %s15, 0
      %p101 = por %p99, %p100
      %p102 = scmp.ne.s32.totalorder %s91, %s94
      %p103 = scmp.eq.s32.totalorder %s20, 2
      %p104 = por %p102, %p103
      %p105 = scmp.ne.s32.totalorder %s94, %s95
      %p106 = scmp.eq.s32.totalorder %s20, 0
      %p107 = por %p105, %p106
      %p108 = scmp.ne.s32.totalorder %s94, %s95
      %p109 = scmp.eq.s32.totalorder %s21, 2
      %p110 = por %p108, %p109
      %p112 = scmp.ne.s32.totalorder %s95, %s111
      %p113 = scmp.eq.s32.totalorder %s21, 0
      %p114 = por %p112, %p113
      %p115 = scmp.le.s32.totalorder 1, %s15
      %p116 = scmp.lt.s32.totalorder %s15, 4
      %p117 = pnand %p115, %p116
      %p118 = pneg %p117
      // Predicated region
      $region9: #{tpu_custom_call.1} parent=5 // pred_check
        _
      $region10: #{tpu_custom_call.1} parent=5 // pred_check_branch
        %120 = sbr.rel (%p117) target = $region12
      $region11: #{tpu_custom_call.1} parent=5 // pred_region
        %s121 = ssub.s32 %s15, 1
        // Predicated region
        $region13: #{tpu_custom_call.1} parent=11 // pred_check
          %p122 = pneg %p53
        $region14: #{tpu_custom_call.1} parent=11 // pred_check_branch
          %124 = sbr.rel (%p122) target = $region16
        $region15: #{tpu_custom_call.1} parent=11 // pred_region
          %s126 = ssub.s32 128, 128
          %127 = vsyncadd [#allocation3], %s126
          %s128 = smul.addr %s25, 128
          %s129 = scalar_lea.hbm %s0, %s128
          %s131 = sshll.u32 [#allocation2], 4
          %s132 = int_to_ptr.vmem [resolvable:$true] %s131
          %134 = dma.hbm_to_vmem [thread:$0]  %s129, 128, %s132, [#allocation3]
        $region16: #{tpu_custom_call.1} parent=11 // pred_fallthru
          _
      $region12: #{tpu_custom_call.1} parent=5 // pred_fallthru
        _
      %p135 = scmp.lt.s32.totalorder %s15, 3
      // Predicated region
      $region17: #{tpu_custom_call.1} parent=5 // pred_check
        %p136 = pneg %p135
      $region18: #{tpu_custom_call.1} parent=5 // pred_check_branch
        %138 = sbr.rel (%p136) target = $region20
      $region19: #{tpu_custom_call.1} parent=5 // pred_region
        // Predicated region
        $region21: #{tpu_custom_call.1} parent=19 // pred_check
          %p139 = pneg %p73
        $region22: #{tpu_custom_call.1} parent=19 // pred_check_branch
          %141 = sbr.rel (%p139) target = $region24
        $region23: #{tpu_custom_call.1} parent=19 // pred_region
          %s142 = sand.u32 %s63, 1
          %s143 = scalar_lea.sflag [#allocation6], %s142
          %s144 = sand.u32 %s63, 1
          %s145 = smul.addr %s144, 64
          %s146 = scalar_lea.vmem [#allocation5], %s145
          %s148 = ssub.s32 1024, 1024
          %149 = vsyncadd %s143, %s148
          %s150 = smul.addr %s22, 64
          %s151 = scalar_lea.hbm %s1, %s150
          %s152 = sshll.u32 %s146, 4
          %s153 = int_to_ptr.vmem [resolvable:$true] %s152
          %158 = dma.hbm_to_vmem [thread:$0]  %s151, 1024, %s153, %s143, 192, 64, 4
        $region24: #{tpu_custom_call.1} parent=19 // pred_fallthru
          _
      $region20: #{tpu_custom_call.1} parent=5 // pred_fallthru
        _
      %p159 = scmp.le.s32.totalorder 1, %s15
      %p160 = scmp.lt.s32.totalorder %s15, 4
      %p161 = pnand %p159, %p160
      %p162 = pneg %p161
      // Predicated region
      $region25: #{tpu_custom_call.1} parent=5 // pred_check
        _
      $region26: #{tpu_custom_call.1} parent=5 // pred_check_branch
        %164 = sbr.rel (%p161) target = $region28
      $region27: #{tpu_custom_call.1} parent=5 // pred_region
        %s165 = ssub.s32 %s15, 1
        // Predicated region
        $region29: #{tpu_custom_call.1} parent=27 // pred_check
          %p166 = pneg %p53
        $region30: #{tpu_custom_call.1} parent=27 // pred_check_branch
          %168 = sbr.rel (%p166) target = $region32
        $region31: #{tpu_custom_call.1} parent=27 // pred_region
          %169 = dma.done [#allocation3], 128
        $region32: #{tpu_custom_call.1} parent=27 // pred_fallthru
          _
        %s170 = sand.u32 %s66, 1
        %s171 = scalar_lea.sflag [#allocation6], %s170
        %s172 = sand.u32 %s66, 1
        %s173 = smul.addr %s172, 64
        %s174 = scalar_lea.vmem [#allocation5], %s173
        // Predicated region
        $region33: #{tpu_custom_call.1} parent=27 // pred_check
          %p175 = pneg %p79
        $region34: #{tpu_custom_call.1} parent=27 // pred_check_branch
          %177 = sbr.rel (%p175) target = $region36
        $region35: #{tpu_custom_call.1} parent=27 // pred_region
          %178 = dma.done %s171, 1024
        $region36: #{tpu_custom_call.1} parent=27 // pred_fallthru
          _
        %p179 = pneg %p53
        %p180 = pneg %p50
        %s181 = sand.u32 %s66, 1
        %s182 = scalar_lea.sflag [#allocation6], %s181
        %s183 = sand.u32 %s66, 1
        %s184 = smul.addr %s183, 64
        %s185 = scalar_lea.vmem [#allocation5], %s184
        %p186 = pneg %p79
        %p187 = pneg %p76
        %p188 = pneg %p107
        %p189 = pneg %p104
        %s190 = sand.u32 %s94, 1
        %s191 = scalar_lea.sflag [#allocation4], %s190
        %s192 = sand.u32 %s94, 1
        %s193 = smul.addr %s192, 8
        %s194 = scalar_lea.vmem [#allocation7], %s193
        %v196 = vld [vmem:[#allocation2] sm:$0xff]
        %v197 = vlaneseq
        %v198 = vand.u32 %v197, 127
        %vm199 = vcmp.lt.s32.totalorder %v198, 128
        %200 = vadd.xlane.f32.xlu0 %v196
        %v201 = vpop.xlane.xlu0 %200
        %v202 = vmul.f32 %v201, 0.0078125
        %v203 = vsub.f32 %v196, %v202
        %v204 = vsel %vm199, %v203, 0.0
        %v205 = vmul.f32 %v204, %v204
        %206 = vadd.xlane.f32.xlu0 %v205
        %v207 = vpop.xlane.xlu0 %206
        %v208 = vmul.f32 %v207, 0.0078125
        %v209 = vrsqrt.pop %v208
        %v210 = vmul.f32 %v208, %v209
        %vm211 = vcmp.eq.f32.partialorder %v208, inf
        %v212 = vsel %vm211, %v208, %v210
        %vm213 = vcmp.eq.f32.partialorder %v208, 0.0
        %v214 = vand.u32 %v208, 2147483648
        %v215 = vsel %vm213, %v214, %v212
        %vm216 = vcmp.ge.f32.partialorder %v215, 1e-06
        %v217 = vpack.c.bf16 %v196, %v196
        %v218 = vld [vmem:[%s174] sm:$0xf]
        %v219 = vld [vmem:[%s174 + $0x4] sm:$0xf]
        %v220 = vld [vmem:[%s174 + $0x8] sm:$0xf]
        %v221 = vld [vmem:[%s174 + $0xc] sm:$0xf]
        %v222 = vld [vmem:[%s174 + $0x10] sm:$0xf]
        %v223 = vld [vmem:[%s174 + $0x14] sm:$0xf]
        %v224 = vld [vmem:[%s174 + $0x18] sm:$0xf]
        %v225 = vld [vmem:[%s174 + $0x1c] sm:$0xf]
        %v226 = vld [vmem:[%s174 + $0x20] sm:$0xf]
        %v227 = vld [vmem:[%s174 + $0x24] sm:$0xf]
        %v228 = vld [vmem:[%s174 + $0x28] sm:$0xf]
        %v229 = vld [vmem:[%s174 + $0x2c] sm:$0xf]
        %v230 = vld [vmem:[%s174 + $0x30] sm:$0xf]
        %v231 = vld [vmem:[%s174 + $0x34] sm:$0xf]
        %v232 = vld [vmem:[%s174 + $0x38] sm:$0xf]
        %v233 = vld [vmem:[%s174 + $0x3c] sm:$0xf]
        %v250 = vunpack.c.l.b16 %v218
        %v251 = vunpack.c.l.b16 %v219
        %v252 = vunpack.c.l.b16 %v220
        %v253 = vunpack.c.l.b16 %v221
        %v254 = vunpack.c.l.b16 %v222
        %v255 = vunpack.c.l.b16 %v223
        %v256 = vunpack.c.l.b16 %v224
        %v257 = vunpack.c.l.b16 %v225
        %v258 = vunpack.c.l.b16 %v226
        %v259 = vunpack.c.l.b16 %v227
        %v260 = vunpack.c.l.b16 %v228
        %v261 = vunpack.c.l.b16 %v229
        %v262 = vunpack.c.l.b16 %v230
        %v263 = vunpack.c.l.b16 %v231
        %v264 = vunpack.c.l.b16 %v232
        %v265 = vunpack.c.l.b16 %v233
        %v266 = vpack.c.b16 %v251, %v250
        %v267 = vpack.c.b16 %v253, %v252
        %v268 = vpack.c.b16 %v255, %v254
        %v269 = vpack.c.b16 %v257, %v256
        %v270 = vpack.c.b16 %v259, %v258
        %v271 = vpack.c.b16 %v261, %v260
        %v272 = vpack.c.b16 %v263, %v262
        %v273 = vpack.c.b16 %v265, %v264
        %282 = vmatprep.subr.bf16.mxu0 0
        %283 = vmatpush1.bf16.msra.mxu0 %v266
        %284 = vmatprep.subr.bf16.mxu0 0
        %285 = vmatpush1.bf16.msra.mxu0 %v267
        %286 = vmatprep.subr.bf16.mxu0 0
        %287 = vmatpush1.bf16.msra.mxu0 %v268
        %288 = vmatprep.subr.bf16.mxu0 0
        %289 = vmatpush1.bf16.msra.mxu0 %v269
        %290 = vmatprep.subr.bf16.mxu0 0
        %291 = vmatpush1.bf16.msra.mxu0 %v270
        %292 = vmatprep.subr.bf16.mxu0 0
        %293 = vmatpush1.bf16.msra.mxu0 %v271
        %294 = vmatprep.subr.bf16.mxu0 0
        %295 = vmatpush1.bf16.msra.mxu0 %v272
        %296 = vmatprep.subr.bf16.mxu0 0
        %297 = vmatpush1.bf16.msra.mxu0 %v273
        %298 = vmatprep.subr.bf16.mxu0 0
        %299 = vmatpush1.bf16.msra.mxu0 0
        %300 = vmatprep.subr.bf16.mxu0 0
        %301 = vmatpush1.bf16.msra.mxu0 0
        %302 = vmatprep.subr.bf16.mxu0 0
        %303 = vmatpush1.bf16.msra.mxu0 0
        %304 = vmatprep.subr.bf16.mxu0 0
        %305 = vmatpush1.bf16.msra.mxu0 0
        %306 = vmatprep.subr.bf16.mxu0 0
        %307 = vmatpush1.bf16.msra.mxu0 0
        %308 = vmatprep.subr.bf16.mxu0 0
        %309 = vmatpush1.bf16.msra.mxu0 0
        %310 = vmatprep.subr.bf16.mxu0 0
        %311 = vmatpush1.bf16.msra.mxu0 0
        %312 = vmatprep.subr.bf16.mxu0 0
        %313 = vmatpush1.bf16.msra.mxu0 0
        %314 = vmatprep.mubr.bf16.mxu0 0
        %315 = vmatmul.mubr.bf16.gmra.mrb[0].mxu0 %v217
        %v316 = vpop.f32.mrb[0].mxu0
        %v317 = vadd.f32 0.0, %v316
        %v318 = vpop.f32.mrb[0].mxu0
        %v319 = vpop.f32.mrb[0].mxu0
        %v320 = vpop.f32.mrb[0].mxu0
        %321 = vdwg.mxu0
        %v322 = vsel %vm216, 1, 0
        %vm323 = vcmp.eq.s32.totalorder %v322, 1
        %v324 = vsel %vm323, %v317, 0.0
        %325 = vst [vmem:[%s194] sm:$0xff] %v324
        %s326 = sand.u32 %s94, 1
        %s327 = scalar_lea.sflag [#allocation4], %s326
        %s328 = sand.u32 %s94, 1
        %s329 = smul.addr %s328, 8
        %s330 = scalar_lea.vmem [#allocation7], %s329
        // Predicated region
        $region37: #{tpu_custom_call.1} parent=27 // pred_check
          %p331 = pneg %p104
        $region38: #{tpu_custom_call.1} parent=27 // pred_check_branch
          %333 = sbr.rel (%p331) target = $region40
        $region39: #{tpu_custom_call.1} parent=27 // pred_region
          %s335 = ssub.s32 128, 128
          %336 = vsyncadd %s327, %s335
          %s337 = smul.addr %s25, 3
          %s338 = sadd.s32 %s24, %s337
          %s339 = smul.addr %s338, 128
          %s340 = scalar_lea.hbm %s2, %s339
          %s342 = sshll.u32 %s330, 4
          %s343 = int_to_ptr.vmem [resolvable:$true] %s342
          %345 = dma.vmem_to_hbm [thread:$0]  %s343, 128, %s340, %s327
        $region40: #{tpu_custom_call.1} parent=27 // pred_fallthru
          _
      $region28: #{tpu_custom_call.1} parent=5 // pred_fallthru
        _
      %p346 = scmp.le.s32.totalorder 2, %s15
      // Predicated region
      $region41: #{tpu_custom_call.1} parent=5 // pred_check
        %p347 = pneg %p346
      $region42: #{tpu_custom_call.1} parent=5 // pred_check_branch
        %349 = sbr.rel (%p347) target = $region44
      $region43: #{tpu_custom_call.1} parent=5 // pred_region
        %s350 = ssub.s32 %s15, 2
        // Predicated region
        $region45: #{tpu_custom_call.1} parent=43 // pred_check
          %p351 = pneg %p110
        $region46: #{tpu_custom_call.1} parent=43 // pred_check_branch
          %353 = sbr.rel (%p351) target = $region48
        $region47: #{tpu_custom_call.1} parent=43 // pred_region
          %s354 = sand.u32 %s95, 1
          %s355 = scalar_lea.sflag [#allocation4], %s354
          %s356 = sand.u32 %s95, 1
          %s357 = smul.addr %s356, 8
          %s358 = scalar_lea.vmem [#allocation7], %s357
          %359 = dma.done %s355, 128
        $region48: #{tpu_custom_call.1} parent=43 // pred_fallthru
          _
      $region44: #{tpu_custom_call.1} parent=5 // pred_fallthru
        _
    $region6: #{tpu_custom_call.1} parent=1 // loop_footer
      %s19 = sadd.s32 1, %s15
    $region7: #{tpu_custom_call.1} parent=1 // loop_footer_branch
      %14 = sbr.rel target = $region3
    $region8: #{tpu_custom_call.1} parent=1 // loop_exit
      _
    %360 = vsyncpa [#allocation3], 1
    %s361 = scalar_lea.sflag [#allocation3], 1
    %362 = vsyncpa %s361, 1
    %363 = vsyncpa [#allocation6], 1
    %s364 = scalar_lea.sflag [#allocation6], 1
    %365 = vsyncpa %s364, 1
    %366 = vsyncpa [#allocation4], 1
    %s367 = scalar_lea.sflag [#allocation4], 1
    %368 = vsyncpa %s367, 1

</llo_original>
